<compile_context>
chip_gen: v7x
topology: tpu7x:2x2x1
jax: 0.10.0
libtpu: 0.0.40
codegen_flags: <defaults>
</compile_context>

<pallas_src>
import jax
import jax.numpy as jnp
from jax.experimental import pallas as pl
from jax.experimental.pallas import tpu as pltpu


def _round_up(x, m):
    return ((x + m - 1) // m) * m


def _contextualize_kernel(x_ref, w_ref, o_ref):
    # x_ref: (TS, Dp) f32   -- one sequence tile of one sentence (D zero-padded, lane-dense)
    # w_ref: (Dp, R)  bf16  -- current layer's projection; resident while the layer index is fixed
    # o_ref: (TS, R)  f32   -- stored straight into the final (B, L, S, R) layout
    x = x_ref[...].astype(jnp.bfloat16)  # VPU cast in-kernel; HBM x stays a single f32 read
    o_ref[...] = jnp.dot(x, w_ref[...], preferred_element_type=jnp.float32)  # MXU, f32 accum


def contextualize(embeddings, layer_weights, *, ts_cap=512):
    """embeddings: (B, S, Dp) f32 with Dp % 128 == 0; layer_weights: (L, Dp, R) bf16.
    Returns (B, L, S, R) f32, produced in final layout by the kernel (no XLA transpose)."""
    B, S, Dp = embeddings.shape
    L, Dp2, R = layer_weights.shape
    assert Dp == Dp2 and Dp % 128 == 0

    TS = min(_round_up(S, 16), ts_cap)        # 16-aligned seq tile, fat but capped
    Sp = _round_up(S, TS)                     # whole number of tiles
    x = embeddings
    if Sp != S:
        x = jnp.pad(x, ((0, 0), (0, Sp - S), (0, 0)))

    grid = (L, B, Sp // TS)                   # L outermost -> each layer's weights DMA'd once

    # Explicit VMEM budget: double-buffered x / w / out blocks (+ headroom),
    # capped below v7x's 64 MiB/TC so the same kernel runs on v5e/v6e/v7x.
    vmem_needed = 2 * (TS * Dp * 4 + Dp * R * 2 + TS * R * 4)
    vmem_limit = int(max(min(vmem_needed * 2 + (4 << 20), 56 << 20), 16 << 20))

    out = pl.pallas_call(
        _contextualize_kernel,
        out_shape=jax.ShapeDtypeStruct((B, L, Sp, R), jnp.float32),
        grid_spec=pltpu.PrefetchScalarGridSpec(
            num_scalar_prefetch=0,
            grid=grid,
            in_specs=[
                # one (sentence, seq-tile) block of embeddings per grid step
                pl.BlockSpec((None, TS, Dp), lambda l, b, s: (b, s, 0)),
                # current layer's weights; block index depends only on l ->
                # stays resident across all (b, s) inner iterations
                pl.BlockSpec((None, Dp, R), lambda l, b, s: (l, 0, 0)),
            ],
            # write directly into the final (B, L, S, R) layout
            out_specs=pl.BlockSpec((None, None, TS, R), lambda l, b, s: (b, l, s, 0)),
        ),
        compiler_params=pltpu.CompilerParams(
            dimension_semantics=("parallel", "parallel", "arbitrary"),
            vmem_limit_bytes=vmem_limit,
        ),
    )(x, layer_weights)

    if Sp != S:
        out = out[:, :, :S, :]                # strip seq padding only (R was never padded)
    return out


class PallasContextualizer:
    """Concrete, deterministic Contextualizer. Sentences are given as token-id
    sequences (tokenization of raw strings is host-side and not translatable)."""

    def __init__(self, vocab_size=64, emb_dim=32, repr_dim=32, num_layers=3, seed=0):
        key = jax.random.PRNGKey(seed)
        k_emb, k_w = jax.random.split(key)
        self.embedding = jax.random.normal(
            k_emb, (vocab_size, emb_dim), dtype=jnp.float32) * 0.02
        self.layer_weights = jax.random.normal(
            k_w, (num_layers, emb_dim, repr_dim), dtype=jnp.float32) * 0.02
        self.num_layers = num_layers
        self.repr_dim = repr_dim

        # One-time, amortized preprocessing: zero-pad D to a lane-dense multiple of
        # 128 (full MXU K passes) and cast the static weights to bf16 once.
        Dp = _round_up(emb_dim, 128)
        self._embedding_padded = jnp.pad(self.embedding, ((0, 0), (0, Dp - emb_dim)))
        self._layer_weights_bf16 = jnp.pad(
            self.layer_weights, ((0, 0), (0, Dp - emb_dim), (0, 0))).astype(jnp.bfloat16)

    def forward(self, token_ids):
        # token_ids: (B, S) int32 -> List[(num_layers, S, repr_dim) float32]
        embs = jnp.take(self._embedding_padded, token_ids, axis=0)   # (B, S, Dp) glue
        out = contextualize(embs, self._layer_weights_bf16)          # (B, L, S, R) kernel
        return [out[b] for b in range(out.shape[0])]

    __call__ = forward


def _reference(token_ids, embedding, layer_weights):
    # Matches the kernel's numerics: bf16 inputs, f32 accumulation.
    embs = jnp.take(embedding, token_ids, axis=0).astype(jnp.bfloat16).astype(jnp.float32)
    w = layer_weights.astype(jnp.bfloat16).astype(jnp.float32)
    return jnp.einsum("bsd,ldr->blsr", embs, w)              # (B, L, S, R)


if __name__ == "__main__":
    batch, seq_len = 2, 8
    vocab, emb_dim, repr_dim, num_layers = 64, 32, 32, 3

    key = jax.random.PRNGKey(0)
    token_ids = jax.random.randint(key, (batch, seq_len), 0, vocab, dtype=jnp.int32)

    model = PallasContextualizer(
        vocab_size=vocab, emb_dim=emb_dim, repr_dim=repr_dim,
        num_layers=num_layers, seed=0)

    reps = model(token_ids)
    reps = [jax.block_until_ready(r) for r in reps]

    ref = _reference(token_ids, model.embedding, model.layer_weights)
    for b in range(batch):
        assert reps[b].shape == (num_layers, seq_len, repr_dim)
        assert jnp.allclose(reps[b], ref[b], atol=1e-4, rtol=1e-4)

    print("KERNEL_OK")
</pallas_src>

<mosaic_0001>
module attributes {stable_mosaic.version = 11 : i64} {
  func.func @_contextualize_kernel(%arg0: i32, %arg1: i32, %arg2: i32, %arg3: memref<1x16x128xf32, #tpu.memory_space<vmem>>, %arg4: memref<1x128x32xbf16, #tpu.memory_space<vmem>>, %arg5: memref<1x1x16x32xf32, #tpu.memory_space<vmem>>) attributes {dimension_semantics = [#tpu.dimension_semantics<parallel>, #tpu.dimension_semantics<parallel>, #tpu.dimension_semantics<arbitrary>], iteration_bounds = array<i64: 3, 2, 1>, scalar_prefetch = 0 : i64, scratch_operands = 0 : i64, tpu.core_type = #tpu.core_type<tc>, window_params = [{transform_indices = @transform_0, window_bounds = array<i64: 1, 16, 128>}, {transform_indices = @transform_1, window_bounds = array<i64: 1, 128, 32>}, {transform_indices = @transform_2, window_bounds = array<i64: 1, 1, 16, 32>}]} {
    %c0 = arith.constant 0 : index
    %c0_0 = arith.constant 0 : index
    %c0_1 = arith.constant 0 : index
    %0 = vector.load %arg3[%c0, %c0_0, %c0_1] : memref<1x16x128xf32, #tpu.memory_space<vmem>>, vector<1x16x128xf32>
    %1 = vector.shape_cast %0 : vector<1x16x128xf32> to vector<16x128xf32>
    %2 = arith.truncf %1 : vector<16x128xf32> to vector<16x128xbf16>
    %c0_2 = arith.constant 0 : index
    %c0_3 = arith.constant 0 : index
    %c0_4 = arith.constant 0 : index
    %3 = vector.load %arg4[%c0_2, %c0_3, %c0_4] : memref<1x128x32xbf16, #tpu.memory_space<vmem>>, vector<1x128x32xbf16>
    %4 = vector.shape_cast %3 : vector<1x128x32xbf16> to vector<128x32xbf16>
    %cst = arith.constant dense<0.000000e+00> : vector<16x32xf32>
    %5 = tpu.matmul %2, %4, %cst {dimension_numbers = #tpu.dot_dimension_numbers<[1], [0], [0], [1], [0, 0, 1, 1], [], []>} : vector<16x128xbf16>, vector<128x32xbf16>, vector<16x32xf32> -> vector<16x32xf32>
    %c0_5 = arith.constant 0 : index
    %c0_6 = arith.constant 0 : index
    %c0_7 = arith.constant 0 : index
    %c0_8 = arith.constant 0 : index
    %6 = vector.load %arg5[%c0_5, %c0_6, %c0_7, %c0_8] : memref<1x1x16x32xf32, #tpu.memory_space<vmem>>, vector<1x1x16x32xf32>
    %7 = vector.shape_cast %6 : vector<1x1x16x32xf32> to vector<16x32xf32>
    %8 = vector.shape_cast %5 : vector<16x32xf32> to vector<1x1x16x32xf32>
    tpu.vector_store %arg5[%c0_5, %c0_6, %c0_7, %c0_8], %8 {strides = array<i32>} : memref<1x1x16x32xf32, #tpu.memory_space<vmem>>, vector<1x1x16x32xf32>,
    return
  }
  func.func @transform_0(%arg0: i32, %arg1: i32, %arg2: i32) -> (i32, i32, i32) {
    %c0_i32 = arith.constant 0 : i32
    %c0_i32_0 = arith.constant 0 : i32
    return %arg1, %arg2, %c0_i32 : i32, i32, i32
  }
  func.func @transform_1(%arg0: i32, %arg1: i32, %arg2: i32) -> (i32, i32, i32) {
    %c0_i32 = arith.constant 0 : i32
    %c0_i32_0 = arith.constant 0 : i32
    %c0_i32_1 = arith.constant 0 : i32
    return %arg0, %c0_i32, %c0_i32_0 : i32, i32, i32
  }
  func.func @transform_2(%arg0: i32, %arg1: i32, %arg2: i32) -> (i32, i32, i32, i32) {
    %c0_i32 = arith.constant 0 : i32
    %c0_i32_0 = arith.constant 0 : i32
    return %arg1, %arg0, %arg2, %c0_i32 : i32, i32, i32, i32
  }
}

</mosaic_0001>

<llo_original>
// kernel: tpu_custom_call.1
$region0: #{tpu_custom_call.1}
  #allocation0 [shape = 'u32[]', space=smem, size = 0x4, offset = 0x4, fixed_abs, tag = 'smem constant byte address 0x4 - core index']
  #allocation1 [shape = 'u32[144,128]{1,0:T(1,128)}', space=vmem, size = 0x12000, scoped, tag = 'internal scratch']
  %s0 = inlined_call_operand.vmem [shape: f32[2,16,128], index: 0, kind: input, shape index: {}]
  %s1 = inlined_call_operand.vmem [shape: bf16[3,128,32], index: 1, kind: input, shape index: {}]
  %s2 = inlined_call_operand.hbm [shape: f32[2,3,16,32], index: 2, kind: output, shape index: {}]
  %s3 = sld [smem:[#allocation0]]
  $region41: #{tpu_custom_call.1} parent=0
    _
  %s5 = ssub.s32 1, %s3
  %s6 = scalar_select 0, %s5, %s3
  $region1: #{tpu_custom_call.1} parent=0
    #allocation2 [shape = 'u8[16384]{0}', space=vmem, size = 0x4000, scoped, tag = 'output window, operand 0']
    #allocation3 [shape = 's32[2]{0}', space=sflag, size = 0x8, scoped, tag = 'scoped memory for tpu_custom_call.1']
    %7 = vsyncpa [#allocation3], 0
    %s8 = scalar_lea.sflag [#allocation3], 1
    %9 = vsyncpa %s8, 0
    loop: start=0, step=1, limit=8
    $region2: #{tpu_custom_call.1} parent=1 // loop_pre_header
      _
    $region3: #{tpu_custom_call.1} parent=1 // loop_header
      %s11 = sphi 0, %s15
      %p12 = scmp.ge.s32.totalorder %s11, 8
      %s18 = sphi 0, %s37
      %s19 = sphi 0, %s33
      %s20 = sphi 0, %s29
      %s21 = sphi 0, %s18
      %s22 = sphi 0, %s19
      %s23 = sphi 0, %s20
      %s24 = sphi 0, %s21
      %s25 = sphi 0, %s22
      %s26 = sphi 0, %s23
      %s42 = sphi 0, %s44
      %s45 = sphi 0, %s42
      %s46 = sphi 0, %s45
      %s62 = sphi 0, %s46
      %s68 = sphi 0, %s70
      %s71 = sphi 0, %s68
      %s72 = sphi 0, %s71
      %s88 = sphi 0, %s72
      %s98 = sphi 0, %s100
      %s101 = sphi 0, %s98
      %s102 = sphi 0, %s101
      %s118 = sphi 0, %s102
    $region4: #{tpu_custom_call.1} parent=1 // loop_header_branch
      %14 = sbr.rel (%p12) target = $region8
    $region5: #{tpu_custom_call.1} parent=1 // loop_body
      %s16 = ssub.s32 %s11, 1
      %s17 = ssub.s32 %s11, 2
      %s27 = sadd.s32 1, %s20
      %p28 = scmp.ge.s32.totalorder %s27, 1
      %s29 = scalar_select %p28, 0, %s27
      %s30 = sadd.s32 1, %s19
      %s31 = scalar_select %p28, %s30, %s19
      %p32 = scmp.ge.s32.totalorder %s31, 2
      %s33 = scalar_select %p32, 0, %s31
      %s34 = sadd.s32 1, %s18
      %s35 = scalar_select %p32, %s34, %s18
      %p36 = scmp.ge.s32.totalorder %s35, 3
      %s37 = scalar_select %p36, 0, %s35
      %s38 = ssub.s32 %s19, %s33
      %s39 = ssub.s32 %s20, %s29
      %s40 = sor.u32 %s38, %s39
      %p41 = scmp.eq.s32.totalorder %s40, 0
      %s43 = sadd.s32 %s42, 1
      %s44 = scalar_select %p41, %s42, %s43
      %p47 = pneg %p41
      %p48 = scmp.eq.s32.totalorder %s11, 5
      %p49 = por %p47, %p48
      %p50 = scmp.ne.s32.totalorder %s42, %s45
      %p51 = scmp.eq.s32.totalorder %s11, 0
      %p52 = por %p50, %p51
      %p53 = scmp.ne.s32.totalorder %s42, %s45
      %p54 = scmp.eq.s32.totalorder %s16, 5
      %p55 = por %p53, %p54
      %p56 = scmp.ne.s32.totalorder %s45, %s46
      %p57 = scmp.eq.s32.totalorder %s16, 0
      %p58 = por %p56, %p57
      %p59 = scmp.ne.s32.totalorder %s45, %s46
      %p60 = scmp.eq.s32.totalorder %s17, 5
      %p61 = por %p59, %p60
      %p63 = scmp.ne.s32.totalorder %s46, %s62
      %p64 = scmp.eq.s32.totalorder %s17, 0
      %p65 = por %p63, %p64
      %s66 = ssub.s32 %s18, %s37
      %p67 = scmp.eq.s32.totalorder %s66, 0
      %s69 = sadd.s32 %s68, 1
      %s70 = scalar_select %p67, %s68, %s69
      %p73 = pneg %p67
      %p74 = scmp.eq.s32.totalorder %s11, 5
      %p75 = por %p73, %p74
      %p76 = scmp.ne.s32.totalorder %s68, %s71
      %p77 = scmp.eq.s32.totalorder %s11, 0
      %p78 = por %p76, %p77
      %p79 = scmp.ne.s32.totalorder %s68, %s71
      %p80 = scmp.eq.s32.totalorder %s16, 5
      %p81 = por %p79, %p80
      %p82 = scmp.ne.s32.totalorder %s71, %s72
      %p83 = scmp.eq.s32.totalorder %s16, 0
      %p84 = por %p82, %p83
      %p85 = scmp.ne.s32.totalorder %s71, %s72
      %p86 = scmp.eq.s32.totalorder %s17, 5
      %p87 = por %p85, %p86
      %p89 = scmp.ne.s32.totalorder %s72, %s88
      %p90 = scmp.eq.s32.totalorder %s17, 0
      %p91 = por %p89, %p90
      %s92 = ssub.s32 %s19, %s33
      %s93 = ssub.s32 %s18, %s37
      %s94 = sor.u32 %s92, %s93
      %s95 = ssub.s32 %s20, %s29
      %s96 = sor.u32 %s94, %s95
      %p97 = scmp.eq.s32.totalorder %s96, 0
      %s99 = sadd.s32 %s98, 1
      %s100 = scalar_select %p97, %s98, %s99
      %p103 = pneg %p97
      %p104 = scmp.eq.s32.totalorder %s11, 5
      %p105 = por %p103, %p104
      %p106 = scmp.ne.s32.totalorder %s98, %s101
      %p107 = scmp.eq.s32.totalorder %s11, 0
      %p108 = por %p106, %p107
      %p109 = scmp.ne.s32.totalorder %s98, %s101
      %p110 = scmp.eq.s32.totalorder %s16, 5
      %p111 = por %p109, %p110
      %p112 = scmp.ne.s32.totalorder %s101, %s102
      %p113 = scmp.eq.s32.totalorder %s16, 0
      %p114 = por %p112, %p113
      %p115 = scmp.ne.s32.totalorder %s101, %s102
      %p116 = scmp.eq.s32.totalorder %s17, 5
      %p117 = por %p115, %p116
      %p119 = scmp.ne.s32.totalorder %s102, %s118
      %p120 = scmp.eq.s32.totalorder %s17, 0
      %p121 = por %p119, %p120
      %p122 = scmp.le.s32.totalorder 1, %s11
      %p123 = scmp.lt.s32.totalorder %s11, 7
      %p124 = pnand %p122, %p123
      %p125 = pneg %p124
      // Predicated region
      $region9: #{tpu_custom_call.1} parent=5 // pred_check
        _
      $region10: #{tpu_custom_call.1} parent=5 // pred_check_branch
        %127 = sbr.rel (%p124) target = $region12
      $region11: #{tpu_custom_call.1} parent=5 // pred_region
        %s128 = ssub.s32 %s11, 1
      $region12: #{tpu_custom_call.1} parent=5 // pred_fallthru
        _
      %p129 = scmp.lt.s32.totalorder %s11, 6
      // Predicated region
      $region13: #{tpu_custom_call.1} parent=5 // pred_check
        %p130 = pneg %p129
      $region14: #{tpu_custom_call.1} parent=5 // pred_check_branch
        %132 = sbr.rel (%p130) target = $region16
      $region15: #{tpu_custom_call.1} parent=5 // pred_region
        // Predicated region
        $region17: #{tpu_custom_call.1} parent=15 // pred_check
          %p133 = pneg %p52
        $region18: #{tpu_custom_call.1} parent=15 // pred_check_branch
          %135 = sbr.rel (%p133) target = $region20
        $region19: #{tpu_custom_call.1} parent=15 // pred_region
          %s136 = smul.u32 2, %s20
          %p137 = scmp.lt.s32.totalorder %s19, 1
          %s138 = scalar_select %p137, %s19, 1
          %p139 = scmp.lt.s32.totalorder %s136, 1
          %s140 = scalar_select %p139, %s136, 1
          %s141 = smul.addr %s138, 2
          %s142 = sadd.s32 %s140, %s141
          %s143 = smul.addr %s142, 8
          %s144 = scalar_lea.vmem %s0, %s143
          %s145 = smul.u32 2, %s20
        $region20: #{tpu_custom_call.1} parent=15 // pred_fallthru
          _
        // Predicated region
        $region21: #{tpu_custom_call.1} parent=15 // pred_check
          %p146 = pneg %p78
        $region22: #{tpu_custom_call.1} parent=15 // pred_check_branch
          %148 = sbr.rel (%p146) target = $region24
        $region23: #{tpu_custom_call.1} parent=15 // pred_region
          %p149 = scmp.lt.s32.totalorder %s18, 2
          %s150 = scalar_select %p149, %s18, 2
          %s151 = smul.addr %s150, 16
          %s152 = smul.addr %s151, 4
          %s153 = scalar_lea.vmem %s1, %s152
        $region24: #{tpu_custom_call.1} parent=15 // pred_fallthru
          _
      $region16: #{tpu_custom_call.1} parent=5 // pred_fallthru
        _
      %p154 = scmp.le.s32.totalorder 1, %s11
      %p155 = scmp.lt.s32.totalorder %s11, 7
      %p156 = pnand %p154, %p155
      %p157 = pneg %p156
      // Predicated region
      $region25: #{tpu_custom_call.1} parent=5 // pred_check
        _
      $region26: #{tpu_custom_call.1} parent=5 // pred_check_branch
        %159 = sbr.rel (%p156) target = $region28
      $region27: #{tpu_custom_call.1} parent=5 // pred_region
        %s160 = ssub.s32 %s11, 1
        %s161 = smul.u32 2, %s23
        %p162 = scmp.lt.s32.totalorder %s22, 1
        %s163 = scalar_select %p162, %s22, 1
        %p164 = scmp.lt.s32.totalorder %s161, 1
        %s165 = scalar_select %p164, %s161, 1
        %s166 = smul.addr %s163, 2
        %s167 = sadd.s32 %s165, %s166
        %s168 = smul.addr %s167, 8
        %s169 = scalar_lea.vmem %s0, %s168
        %p170 = pneg %p58
        %p171 = pneg %p55
        %p172 = scmp.lt.s32.totalorder %s21, 2
        %s173 = scalar_select %p172, %s21, 2
        %s174 = smul.addr %s173, 16
        %s175 = smul.addr %s174, 4
        %s176 = scalar_lea.vmem %s1, %s175
        %p177 = pneg %p84
        %p178 = pneg %p81
        %p179 = pneg %p114
        %p180 = pneg %p111
        %s181 = sand.u32 %s101, 1
        %s182 = scalar_lea.sflag [#allocation3], %s181
        %s183 = sand.u32 %s101, 1
        %s184 = smul.addr %s183, 16
        %s185 = scalar_lea.vmem [#allocation2], %s184
        %s186 = smul.u32 2, %s23
        %p187 = scmp.lt.s32.totalorder %s22, 1
        %s188 = scalar_select %p187, %s22, 1
        %p189 = scmp.lt.s32.totalorder %s186, 1
        %s190 = scalar_select %p189, %s186, 1
        %s191 = smul.addr %s188, 2
        %s192 = sadd.s32 %s190, %s191
        %s193 = smul.addr %s192, 8
        %s194 = scalar_lea.vmem %s0, %s193
        %s195 = smul.u32 2, %s23
        %p196 = scmp.lt.s32.totalorder %s21, 2
        %s197 = scalar_select %p196, %s21, 2
        %s198 = smul.addr %s197, 16
        %s199 = smul.addr %s198, 4
        %s200 = scalar_lea.vmem %s1, %s199
        %s201 = smul.u32 2, %s23
        %v203 = vld [vmem:[%s194] sm:$0xff]
        %v204 = vld [vmem:[%s194 + $0x8] sm:$0xff]
        %v205 = vpack.c.bf16 %v204, %v203
        %v206 = vld [vmem:[%s200] sm:$0xf]
        %v207 = vld [vmem:[%s200 + $0x4] sm:$0xf]
        %v208 = vld [vmem:[%s200 + $0x8] sm:$0xf]
        %v209 = vld [vmem:[%s200 + $0xc] sm:$0xf]
        %v210 = vld [vmem:[%s200 + $0x10] sm:$0xf]
        %v211 = vld [vmem:[%s200 + $0x14] sm:$0xf]
        %v212 = vld [vmem:[%s200 + $0x18] sm:$0xf]
        %v213 = vld [vmem:[%s200 + $0x1c] sm:$0xf]
        %v214 = vld [vmem:[%s200 + $0x20] sm:$0xf]
        %v215 = vld [vmem:[%s200 + $0x24] sm:$0xf]
        %v216 = vld [vmem:[%s200 + $0x28] sm:$0xf]
        %v217 = vld [vmem:[%s200 + $0x2c] sm:$0xf]
        %v218 = vld [vmem:[%s200 + $0x30] sm:$0xf]
        %v219 = vld [vmem:[%s200 + $0x34] sm:$0xf]
        %v220 = vld [vmem:[%s200 + $0x38] sm:$0xf]
        %v221 = vld [vmem:[%s200 + $0x3c] sm:$0xf]
        %v238 = vunpack.c.l.b16 %v206
        %v239 = vunpack.c.l.b16 %v207
        %v240 = vunpack.c.l.b16 %v208
        %v241 = vunpack.c.l.b16 %v209
        %v242 = vunpack.c.l.b16 %v210
        %v243 = vunpack.c.l.b16 %v211
        %v244 = vunpack.c.l.b16 %v212
        %v245 = vunpack.c.l.b16 %v213
        %v246 = vunpack.c.l.b16 %v214
        %v247 = vunpack.c.l.b16 %v215
        %v248 = vunpack.c.l.b16 %v216
        %v249 = vunpack.c.l.b16 %v217
        %v250 = vunpack.c.l.b16 %v218
        %v251 = vunpack.c.l.b16 %v219
        %v252 = vunpack.c.l.b16 %v220
        %v253 = vunpack.c.l.b16 %v221
        %v254 = vpack.c.b16 %v239, %v238
        %v255 = vpack.c.b16 %v241, %v240
        %v256 = vpack.c.b16 %v243, %v242
        %v257 = vpack.c.b16 %v245, %v244
        %v258 = vpack.c.b16 %v247, %v246
        %v259 = vpack.c.b16 %v249, %v248
        %v260 = vpack.c.b16 %v251, %v250
        %v261 = vpack.c.b16 %v253, %v252
        %270 = vmatprep.subr.bf16.mxu0 0
        %271 = vmatpush1.bf16.msra.mxu0 %v254
        %272 = vmatprep.subr.bf16.mxu0 0
        %273 = vmatpush1.bf16.msra.mxu0 %v255
        %274 = vmatprep.subr.bf16.mxu0 0
        %275 = vmatpush1.bf16.msra.mxu0 %v256
        %276 = vmatprep.subr.bf16.mxu0 0
        %277 = vmatpush1.bf16.msra.mxu0 %v257
        %278 = vmatprep.subr.bf16.mxu0 0
        %279 = vmatpush1.bf16.msra.mxu0 %v258
        %280 = vmatprep.subr.bf16.mxu0 0
        %281 = vmatpush1.bf16.msra.mxu0 %v259
        %282 = vmatprep.subr.bf16.mxu0 0
        %283 = vmatpush1.bf16.msra.mxu0 %v260
        %284 = vmatprep.subr.bf16.mxu0 0
        %285 = vmatpush1.bf16.msra.mxu0 %v261
        %286 = vmatprep.subr.bf16.mxu0 0
        %287 = vmatpush1.bf16.msra.mxu0 0
        %288 = vmatprep.subr.bf16.mxu0 0
        %289 = vmatpush1.bf16.msra.mxu0 0
        %290 = vmatprep.subr.bf16.mxu0 0
        %291 = vmatpush1.bf16.msra.mxu0 0
        %292 = vmatprep.subr.bf16.mxu0 0
        %293 = vmatpush1.bf16.msra.mxu0 0
        %294 = vmatprep.subr.bf16.mxu0 0
        %295 = vmatpush1.bf16.msra.mxu0 0
        %296 = vmatprep.subr.bf16.mxu0 0
        %297 = vmatpush1.bf16.msra.mxu0 0
        %298 = vmatprep.subr.bf16.mxu0 0
        %299 = vmatpush1.bf16.msra.mxu0 0
        %300 = vmatprep.subr.bf16.mxu0 0
        %301 = vmatpush1.bf16.msra.mxu0 0
        %302 = vmatprep.mubr.bf16.mxu0 0
        %303 = vmatmul.mubr.bf16.gmra.mrb[0].mxu0 %v205
        %v304 = vpop.f32.mrb[0].mxu0
        %v305 = vadd.f32 0.0, %v304
        %v306 = vpop.f32.mrb[0].mxu0
        %v307 = vpop.f32.mrb[0].mxu0
        %v308 = vadd.f32 0.0, %v307
        %v309 = vpop.f32.mrb[0].mxu0
        %310 = vdwg.mxu0
        %vm311 = vcmask 261120
        %312 = vst.msk [vmem:[%s185] sm:$0xff] %vm311, %v305
        %313 = vst.msk [vmem:[%s185 + $0x8] sm:$0xff] %vm311, %v308
        %s314 = sand.u32 %s101, 1
        %s315 = scalar_lea.sflag [#allocation3], %s314
        %s316 = sand.u32 %s101, 1
        %s317 = smul.addr %s316, 16
        %s318 = scalar_lea.vmem [#allocation2], %s317
        // Predicated region
        $region29: #{tpu_custom_call.1} parent=27 // pred_check
          %p319 = pneg %p111
        $region30: #{tpu_custom_call.1} parent=27 // pred_check_branch
          %321 = sbr.rel (%p319) target = $region32
        $region31: #{tpu_custom_call.1} parent=27 // pred_region
          %s322 = smul.u32 2, %s23
          %s324 = ssub.s32 256, 256
          %325 = vsyncadd %s315, %s324
          %s326 = smul.addr %s21, 2
          %s327 = sadd.s32 %s322, %s326
          %s328 = smul.addr %s22, 6
          %s329 = sadd.s32 %s327, %s328
          %s330 = smul.addr %s329, 128
          %s331 = scalar_lea.hbm %s2, %s330
          %s332 = sshll.u32 %s318, 4
          %s333 = int_to_ptr.vmem [resolvable:$true] %s332
          %338 = dma.vmem_to_hbm [thread:$0]  %s333, 256, %s331, %s315, 128, 128, 8
        $region32: #{tpu_custom_call.1} parent=27 // pred_fallthru
          _
      $region28: #{tpu_custom_call.1} parent=5 // pred_fallthru
        _
      %p339 = scmp.le.s32.totalorder 2, %s11
      // Predicated region
      $region33: #{tpu_custom_call.1} parent=5 // pred_check
        %p340 = pneg %p339
      $region34: #{tpu_custom_call.1} parent=5 // pred_check_branch
        %342 = sbr.rel (%p340) target = $region36
      $region35: #{tpu_custom_call.1} parent=5 // pred_region
        %s343 = ssub.s32 %s11, 2
        // Predicated region
        $region37: #{tpu_custom_call.1} parent=35 // pred_check
          %p344 = pneg %p117
        $region38: #{tpu_custom_call.1} parent=35 // pred_check_branch
          %346 = sbr.rel (%p344) target = $region40
        $region39: #{tpu_custom_call.1} parent=35 // pred_region
          %s347 = sand.u32 %s102, 1
          %s348 = scalar_lea.sflag [#allocation3], %s347
          %s349 = sand.u32 %s102, 1
          %s350 = smul.addr %s349, 16
          %s351 = scalar_lea.vmem [#allocation2], %s350
          %352 = dma.done %s348, 256
        $region40: #{tpu_custom_call.1} parent=35 // pred_fallthru
          _
      $region36: #{tpu_custom_call.1} parent=5 // pred_fallthru
        _
    $region6: #{tpu_custom_call.1} parent=1 // loop_footer
      %s15 = sadd.s32 1, %s11
    $region7: #{tpu_custom_call.1} parent=1 // loop_footer_branch
      %10 = sbr.rel target = $region3
    $region8: #{tpu_custom_call.1} parent=1 // loop_exit
      _
    %353 = vsyncpa [#allocation3], 1
    %s354 = scalar_lea.sflag [#allocation3], 1
    %355 = vsyncpa %s354, 1

</llo_original>
